<compile_context>
chip_gen: v7x
topology: tpu7x:2x2x1
jax: 0.10.0
libtpu: 0.0.40
codegen_flags: <defaults>
</compile_context>

<pallas_src>
import functools

import jax
import jax.numpy as jnp
from jax.experimental import pallas as pl
from jax.experimental.pallas import tpu as pltpu

_LANE = 128      # vreg lane width
_SUBLANE = 8     # f32 sublane count


def _round_up(n: int, m: int) -> int:
    return ((n + m - 1) // m) * m


def _fused_mlp_kernel(*refs, n_layers: int, compute_dtype):
    """refs = (x_ref, w0, b0, w1, b1, ..., o_ref). All tiles already in VMEM."""
    x_ref = refs[0]
    o_ref = refs[-1]
    wb = refs[1:-1]

    h = x_ref[...].astype(jnp.float32)
    for i in range(n_layers):
        w = wb[2 * i][...]
        b = wb[2 * i + 1][...]
        # MXU matmul (optionally bf16 inputs), f32 accumulation.
        y = jnp.dot(h.astype(compute_dtype), w.astype(compute_dtype),
                    preferred_element_type=jnp.float32)
        # Epilogue stays f32 (v5e VPU has no bf16). Bias is (1, out) -> broadcasts.
        y = y + b.astype(jnp.float32)
        if i != n_layers - 1:
            y = jnp.maximum(y, 0.0)  # ReLU after every layer except output_linear
        h = y
    o_ref[...] = h.astype(o_ref.dtype)


def init_mlp_params(key, input_size=486, hidden_size=(10,), num_classes=6,
                    dtype=jnp.float32):
    """Matches MLP._initialize_weights: weight ~ N(0, 0.01), bias = 0.

    Weights are stored as (in, out) (transpose of PyTorch's (out, in)) and
    zero-padded to lane-aligned (multiple-of-128) shapes. Biases are stored
    padded as (1, out_padded). Padded rows/cols/lanes are exactly zero so the
    math is unchanged; the wrapper slices back to logical sizes.
    """
    hidden = list(hidden_size) if isinstance(hidden_size, (list, tuple)) else [hidden_size]
    dims = [input_size] + hidden + [num_classes]
    dims_p = [_round_up(d, _LANE) for d in dims]

    layers = []
    for i in range(len(dims) - 1):
        key, sub = jax.random.split(key)
        w = (0.01 * jax.random.normal(sub, (dims[i], dims[i + 1]))).astype(dtype)
        w_p = jnp.zeros((dims_p[i], dims_p[i + 1]), dtype).at[:dims[i], :dims[i + 1]].set(w)
        b_p = jnp.zeros((1, dims_p[i + 1]), dtype)  # PyTorch init: bias = 0
        layers.append((w_p, b_p))
    return {"layers": layers, "dims": dims, "dims_padded": dims_p}


def mlp_forward(x, params, *, compute_dtype=jnp.float32, batch_tile=512):
    """Reproduces MLP.forward (dropout=False) with a single fused pallas_call."""
    layers = params["layers"]
    dims = params["dims"]
    dims_p = params["dims_padded"]
    n_layers = len(layers)

    B = x.shape[0]
    x2 = x.reshape(B, -1)  # x.view(x.size(0), -1)
    assert x2.shape[1] == dims[0], (x2.shape, dims)

    k_pad = dims_p[0]
    out_dim, out_pad = dims[-1], dims_p[-1]

    # Batch tiling: tile must be a sublane multiple; pad B up to a tile multiple.
    tb = min(_round_up(B, _SUBLANE), batch_tile)
    b_pad = _round_up(B, tb)
    grid = (b_pad // tb,)

    # One zero-pad of x to the lane/sublane-aligned slab (486 -> 512, B -> b_pad).
    x_p = jnp.zeros((b_pad, k_pad), x2.dtype).at[:B, :dims[0]].set(x2)

    flat_wb = []
    in_specs = [pl.BlockSpec((tb, k_pad), lambda i: (i, 0))]
    for w_p, b_p in layers:
        flat_wb += [w_p, b_p]
        # Weights/biases: whole-array blocks, same block every grid step -> resident.
        in_specs += [
            pl.BlockSpec(w_p.shape, lambda i: (0, 0)),
            pl.BlockSpec(b_p.shape, lambda i: (0, 0)),
        ]

    kernel = functools.partial(_fused_mlp_kernel, n_layers=n_layers,
                               compute_dtype=compute_dtype)

    out_p = pl.pallas_call(
        kernel,
        out_shape=jax.ShapeDtypeStruct((b_pad, out_pad), x2.dtype),
        grid=grid,
        in_specs=in_specs,
        out_specs=pl.BlockSpec((tb, out_pad), lambda i: (i, 0)),
        compiler_params=pltpu.CompilerParams(
            dimension_semantics=("parallel",)),
    )(x_p, *flat_wb)

    return out_p[:B, :out_dim]
    # TODO(synk): nn.Dropout (dropout=True path) not implemented; default config has dropout=False.


def _reference_forward(x, params):
    """Pure-JAX reference of the same math (unpadded weights sliced from padded)."""
    dims = params["dims"]
    layers = params["layers"]
    ref = x.reshape(x.shape[0], -1)
    for i, (w_p, b_p) in enumerate(layers):
        w = w_p[:dims[i], :dims[i + 1]]
        b = b_p[0, :dims[i + 1]]
        ref = ref @ w + b
        if i != len(layers) - 1:
            ref = jnp.maximum(ref, 0.0)
    return ref


if __name__ == "__main__":
    key = jax.random.PRNGKey(0)
    k_x, k_x2, k_p = jax.random.split(key, 3)

    B, INPUT, HIDDEN, CLASSES = 2, 486, [10], 6
    params = init_mlp_params(k_p, input_size=INPUT, hidden_size=HIDDEN,
                             num_classes=CLASSES)

    # --- small batch, f32 path ---
    x = jax.random.normal(k_x, (B, INPUT), dtype=jnp.float32)
    out = jax.block_until_ready(mlp_forward(x, params))
    assert out.shape == (B, CLASSES), out.shape
    ref = _reference_forward(x, params)
    assert jnp.allclose(out, ref, atol=1e-5, rtol=1e-5)

    # --- bf16-matmul path (v6e/v7x optimization), f32 epilogue; looser tolerance ---
    out_bf16 = jax.block_until_ready(mlp_forward(x, params, compute_dtype=jnp.bfloat16))
    assert out_bf16.shape == (B, CLASSES)
    assert jnp.allclose(out_bf16, ref, atol=1e-2, rtol=5e-2)

    # --- exercise the batch grid (grid > 1) with a slightly larger batch ---
    x_big = jax.random.normal(k_x2, (16, INPUT), dtype=jnp.float32)
    out_big = jax.block_until_ready(mlp_forward(x_big, params, batch_tile=8))
    ref_big = _reference_forward(x_big, params)
    assert out_big.shape == (16, CLASSES)
    assert jnp.allclose(out_big, ref_big, atol=1e-5, rtol=1e-5)

    print("KERNEL_OK")
</pallas_src>

<mosaic_0001>
module attributes {stable_mosaic.version = 11 : i64} {
  func.func @_fused_mlp_kernel(%arg0: i32, %arg1: memref<8x512xf32, #tpu.memory_space<vmem>>, %arg2: memref<512x128xf32, #tpu.memory_space<vmem>>, %arg3: memref<1x128xf32, #tpu.memory_space<vmem>>, %arg4: memref<128x128xf32, #tpu.memory_space<vmem>>, %arg5: memref<1x128xf32, #tpu.memory_space<vmem>>, %arg6: memref<8x128xf32, #tpu.memory_space<vmem>>) attributes {dimension_semantics = [#tpu.dimension_semantics<parallel>], iteration_bounds = array<i64: 1>, scalar_prefetch = 0 : i64, scratch_operands = 0 : i64, tpu.core_type = #tpu.core_type<tc>, window_params = [{transform_indices = @transform_0, window_bounds = array<i64: 8, 512>}, {pipeline_mode = #tpu.pipeline_mode<synchronous>, transform_indices = @transform_1, window_bounds = array<i64: 512, 128>}, {pipeline_mode = #tpu.pipeline_mode<synchronous>, transform_indices = @transform_2, window_bounds = array<i64: 1, 128>}, {pipeline_mode = #tpu.pipeline_mode<synchronous>, transform_indices = @transform_3, window_bounds = array<i64: 128, 128>}, {pipeline_mode = #tpu.pipeline_mode<synchronous>, transform_indices = @transform_4, window_bounds = array<i64: 1, 128>}, {transform_indices = @transform_5, window_bounds = array<i64: 8, 128>}]} {
    %c0 = arith.constant 0 : index
    %c0_0 = arith.constant 0 : index
    %0 = vector.load %arg1[%c0, %c0_0] : memref<8x512xf32, #tpu.memory_space<vmem>>, vector<8x512xf32>
    %c0_1 = arith.constant 0 : index
    %c0_2 = arith.constant 0 : index
    %1 = vector.load %arg2[%c0_1, %c0_2] : memref<512x128xf32, #tpu.memory_space<vmem>>, vector<512x128xf32>
    %c0_3 = arith.constant 0 : index
    %c0_4 = arith.constant 0 : index
    %2 = vector.load %arg3[%c0_3, %c0_4] : memref<1x128xf32, #tpu.memory_space<vmem>>, vector<1x128xf32>
    %cst = arith.constant dense<0.000000e+00> : vector<8x128xf32>
    %3 = tpu.matmul %0, %1, %cst {dimension_numbers = #tpu.dot_dimension_numbers<[1], [0], [0], [1], [0, 0, 1, 1], [], []>} : vector<8x512xf32>, vector<512x128xf32>, vector<8x128xf32> -> vector<8x128xf32>
    %4 = vector.broadcast %2 : vector<1x128xf32> to vector<8x128xf32>
    %5 = arith.addf %3, %4 : vector<8x128xf32>
    %cst_5 = arith.constant 0.000000e+00 : f32
    %6 = vector.broadcast %cst_5 : f32 to vector<8x128xf32>
    %7 = arith.maximumf %5, %6 : vector<8x128xf32>
    %c0_6 = arith.constant 0 : index
    %c0_7 = arith.constant 0 : index
    %8 = vector.load %arg4[%c0_6, %c0_7] : memref<128x128xf32, #tpu.memory_space<vmem>>, vector<128x128xf32>
    %c0_8 = arith.constant 0 : index
    %c0_9 = arith.constant 0 : index
    %9 = vector.load %arg5[%c0_8, %c0_9] : memref<1x128xf32, #tpu.memory_space<vmem>>, vector<1x128xf32>
    %cst_10 = arith.constant dense<0.000000e+00> : vector<8x128xf32>
    %10 = tpu.matmul %7, %8, %cst_10 {dimension_numbers = #tpu.dot_dimension_numbers<[1], [0], [0], [1], [0, 0, 1, 1], [], []>} : vector<8x128xf32>, vector<128x128xf32>, vector<8x128xf32> -> vector<8x128xf32>
    %11 = vector.broadcast %9 : vector<1x128xf32> to vector<8x128xf32>
    %12 = arith.addf %10, %11 : vector<8x128xf32>
    %c0_11 = arith.constant 0 : index
    %c0_12 = arith.constant 0 : index
    %13 = vector.load %arg6[%c0_11, %c0_12] : memref<8x128xf32, #tpu.memory_space<vmem>>, vector<8x128xf32>
    tpu.vector_store %arg6[%c0_11, %c0_12], %12 {strides = array<i32>} : memref<8x128xf32, #tpu.memory_space<vmem>>, vector<8x128xf32>,
    return
  }
  func.func @transform_0(%arg0: i32) -> (i32, i32) {
    %c0_i32 = arith.constant 0 : i32
    %c0_i32_0 = arith.constant 0 : i32
    return %arg0, %c0_i32 : i32, i32
  }
  func.func @transform_1(%arg0: i32) -> (i32, i32) {
    %c0_i32 = arith.constant 0 : i32
    %c0_i32_0 = arith.constant 0 : i32
    %c0_i32_1 = arith.constant 0 : i32
    return %c0_i32, %c0_i32_0 : i32, i32
  }
  func.func @transform_2(%arg0: i32) -> (i32, i32) {
    %c0_i32 = arith.constant 0 : i32
    %c0_i32_0 = arith.constant 0 : i32
    %c0_i32_1 = arith.constant 0 : i32
    return %c0_i32, %c0_i32_0 : i32, i32
  }
  func.func @transform_3(%arg0: i32) -> (i32, i32) {
    %c0_i32 = arith.constant 0 : i32
    %c0_i32_0 = arith.constant 0 : i32
    %c0_i32_1 = arith.constant 0 : i32
    return %c0_i32, %c0_i32_0 : i32, i32
  }
  func.func @transform_4(%arg0: i32) -> (i32, i32) {
    %c0_i32 = arith.constant 0 : i32
    %c0_i32_0 = arith.constant 0 : i32
    %c0_i32_1 = arith.constant 0 : i32
    return %c0_i32, %c0_i32_0 : i32, i32
  }
  func.func @transform_5(%arg0: i32) -> (i32, i32) {
    %c0_i32 = arith.constant 0 : i32
    %c0_i32_0 = arith.constant 0 : i32
    return %arg0, %c0_i32 : i32, i32
  }
}

</mosaic_0001>

<llo_original>
// kernel: tpu_custom_call.1
$region0: #{tpu_custom_call.1}
  #allocation0 [shape = 'u32[]', space=smem, size = 0x4, offset = 0x4, fixed_abs, tag = 'smem constant byte address 0x4 - core index']
  #allocation1 [shape = 'u32[144,128]{1,0:T(1,128)}', space=vmem, size = 0x12000, scoped, tag = 'internal scratch']
  %s0 = inlined_call_operand.hbm [shape: f32[8,512], index: 0, kind: input, shape index: {}]
  %s1 = inlined_call_operand.hbm [shape: f32[512,128], index: 1, kind: input, shape index: {}]
  %s2 = inlined_call_operand.vmem [shape: f32[1,128], index: 2, kind: input, shape index: {}]
  %s3 = inlined_call_operand.hbm [shape: f32[128,128], index: 3, kind: input, shape index: {}]
  %s4 = inlined_call_operand.vmem [shape: f32[1,128], index: 4, kind: input, shape index: {}]
  %s5 = inlined_call_operand.hbm [shape: f32[8,128], index: 5, kind: output, shape index: {}]
  %s6 = sld [smem:[#allocation0]]
  $region42: #{tpu_custom_call.1} parent=0
    _
  %s8 = ssub.s32 1, %s6
  %s9 = scalar_select 0, %s8, %s6
  $region1: #{tpu_custom_call.1} parent=0
    #allocation2 [shape = 'u8[16384]{0}', space=vmem, size = 0x4000, scoped, tag = 'input window, operand 0, single buffered']
    #allocation3 [shape = 's32[1]{0}', space=sflag, size = 0x4, scoped, tag = 'scoped memory for tpu_custom_call.1']
    #allocation4 [shape = 's32[1]{0}', space=sflag, size = 0x4, scoped, tag = 'scoped memory for tpu_custom_call.1']
    #allocation5 [shape = 'u8[262144]{0}', space=vmem, size = 0x40000, scoped, tag = 'input window, operand 1, single buffered']
    #allocation6 [shape = 's32[1]{0}', space=sflag, size = 0x4, scoped, tag = 'scoped memory for tpu_custom_call.1']
    #allocation7 [shape = 'u8[65536]{0}', space=vmem, size = 0x10000, scoped, tag = 'input window, operand 3, single buffered']
    #allocation8 [shape = 'u8[4096]{0}', space=vmem, size = 0x1000, scoped, tag = 'output window, operand 0, single buffered']
    %10 = vsyncpa [#allocation3], 0
    %11 = vsyncpa [#allocation6], 0
    %12 = vsyncpa [#allocation4], 0
    // Predicated region
    $region2: #{tpu_custom_call.1} parent=1 // pred_check
      _
    $region3: #{tpu_custom_call.1} parent=1 // pred_check_branch
      %14 = sbr.rel (0) target = $region5
    $region4: #{tpu_custom_call.1} parent=1 // pred_region
      %s16 = ssub.s32 512, 512
      %17 = vsyncadd [#allocation3], %s16
      %s19 = sshll.u32 [#allocation2], 4
      %s20 = int_to_ptr.vmem [resolvable:$true] %s19
      %22 = dma.hbm_to_vmem [thread:$0]  %s0, 512, %s20, [#allocation3]
    $region5: #{tpu_custom_call.1} parent=1 // pred_fallthru
      _
    // Predicated region
    $region6: #{tpu_custom_call.1} parent=1 // pred_check
      _
    $region7: #{tpu_custom_call.1} parent=1 // pred_check_branch
      %24 = sbr.rel (0) target = $region9
    $region8: #{tpu_custom_call.1} parent=1 // pred_region
      %s26 = ssub.s32 8192, 8192
      %27 = vsyncadd [#allocation6], %s26
      %s28 = sshll.u32 [#allocation5], 4
      %s29 = int_to_ptr.vmem [resolvable:$true] %s28
      %34 = dma.hbm_to_vmem [thread:$0]  %s1, 8192, %s29, [#allocation6], 128, 128, 8
    $region9: #{tpu_custom_call.1} parent=1 // pred_fallthru
      _
    // Predicated region
    $region10: #{tpu_custom_call.1} parent=1 // pred_check
      _
    $region11: #{tpu_custom_call.1} parent=1 // pred_check_branch
      %36 = sbr.rel (0) target = $region13
    $region12: #{tpu_custom_call.1} parent=1 // pred_region
      _
    $region13: #{tpu_custom_call.1} parent=1 // pred_fallthru
      _
    // Predicated region
    $region14: #{tpu_custom_call.1} parent=1 // pred_check
      _
    $region15: #{tpu_custom_call.1} parent=1 // pred_check_branch
      %38 = sbr.rel (0) target = $region17
    $region16: #{tpu_custom_call.1} parent=1 // pred_region
      %s40 = ssub.s32 2048, 2048
      %41 = vsyncadd [#allocation6], %s40
      %s42 = sshll.u32 [#allocation7], 4
      %s43 = int_to_ptr.vmem [resolvable:$true] %s42
      %48 = dma.hbm_to_vmem [thread:$0]  %s3, 2048, %s43, [#allocation6], 128, 128, 8
    $region17: #{tpu_custom_call.1} parent=1 // pred_fallthru
      _
    // Predicated region
    $region18: #{tpu_custom_call.1} parent=1 // pred_check
      _
    $region19: #{tpu_custom_call.1} parent=1 // pred_check_branch
      %50 = sbr.rel (0) target = $region21
    $region20: #{tpu_custom_call.1} parent=1 // pred_region
      _
    $region21: #{tpu_custom_call.1} parent=1 // pred_fallthru
      _
    // Predicated region
    $region22: #{tpu_custom_call.1} parent=1 // pred_check
      _
    $region23: #{tpu_custom_call.1} parent=1 // pred_check_branch
      %52 = sbr.rel (0) target = $region25
    $region24: #{tpu_custom_call.1} parent=1 // pred_region
      %53 = dma.done [#allocation3], 512
    $region25: #{tpu_custom_call.1} parent=1 // pred_fallthru
      _
    // Predicated region
    $region26: #{tpu_custom_call.1} parent=1 // pred_check
      _
    $region27: #{tpu_custom_call.1} parent=1 // pred_check_branch
      %55 = sbr.rel (0) target = $region29
    $region28: #{tpu_custom_call.1} parent=1 // pred_region
      %56 = dma.done [#allocation6], 8192
    $region29: #{tpu_custom_call.1} parent=1 // pred_fallthru
      _
    // Predicated region
    $region30: #{tpu_custom_call.1} parent=1 // pred_check
      _
    $region31: #{tpu_custom_call.1} parent=1 // pred_check_branch
      %58 = sbr.rel (0) target = $region33
    $region32: #{tpu_custom_call.1} parent=1 // pred_region
      %59 = dma.done [#allocation6], 2048
    $region33: #{tpu_custom_call.1} parent=1 // pred_fallthru
      _
    %v60 = vld [vmem:[#allocation2] sm:$0xff]
    %v61 = vld [vmem:[#allocation2 + $0x8] sm:$0xff]
    %v62 = vld [vmem:[#allocation2 + $0x10] sm:$0xff]
    %v63 = vld [vmem:[#allocation2 + $0x18] sm:$0xff]
    %v64 = vld [vmem:[#allocation5] sm:$0xff]
    %v65 = vld [vmem:[#allocation5 + $0x8] sm:$0xff]
    %v66 = vld [vmem:[#allocation5 + $0x10] sm:$0xff]
    %v67 = vld [vmem:[#allocation5 + $0x18] sm:$0xff]
    %v68 = vld [vmem:[#allocation5 + $0x20] sm:$0xff]
    %v69 = vld [vmem:[#allocation5 + $0x28] sm:$0xff]
    %v70 = vld [vmem:[#allocation5 + $0x30] sm:$0xff]
    %v71 = vld [vmem:[#allocation5 + $0x38] sm:$0xff]
    %v72 = vld [vmem:[#allocation5 + $0x40] sm:$0xff]
    %v73 = vld [vmem:[#allocation5 + $0x48] sm:$0xff]
    %v74 = vld [vmem:[#allocation5 + $0x50] sm:$0xff]
    %v75 = vld [vmem:[#allocation5 + $0x58] sm:$0xff]
    %v76 = vld [vmem:[#allocation5 + $0x60] sm:$0xff]
    %v77 = vld [vmem:[#allocation5 + $0x68] sm:$0xff]
    %v78 = vld [vmem:[#allocation5 + $0x70] sm:$0xff]
    %v79 = vld [vmem:[#allocation5 + $0x78] sm:$0xff]
    %v80 = vld [vmem:[#allocation5 + $0x80] sm:$0xff]
    %v81 = vld [vmem:[#allocation5 + $0x88] sm:$0xff]
    %v82 = vld [vmem:[#allocation5 + $0x90] sm:$0xff]
    %v83 = vld [vmem:[#allocation5 + $0x98] sm:$0xff]
    %v84 = vld [vmem:[#allocation5 + $0xa0] sm:$0xff]
    %v85 = vld [vmem:[#allocation5 + $0xa8] sm:$0xff]
    %v86 = vld [vmem:[#allocation5 + $0xb0] sm:$0xff]
    %v87 = vld [vmem:[#allocation5 + $0xb8] sm:$0xff]
    %v88 = vld [vmem:[#allocation5 + $0xc0] sm:$0xff]
    %v89 = vld [vmem:[#allocation5 + $0xc8] sm:$0xff]
    %v90 = vld [vmem:[#allocation5 + $0xd0] sm:$0xff]
    %v91 = vld [vmem:[#allocation5 + $0xd8] sm:$0xff]
    %v92 = vld [vmem:[#allocation5 + $0xe0] sm:$0xff]
    %v93 = vld [vmem:[#allocation5 + $0xe8] sm:$0xff]
    %v94 = vld [vmem:[#allocation5 + $0xf0] sm:$0xff]
    %v95 = vld [vmem:[#allocation5 + $0xf8] sm:$0xff]
    %v96 = vld [vmem:[#allocation5 + $0x100] sm:$0xff]
    %v97 = vld [vmem:[#allocation5 + $0x108] sm:$0xff]
    %v98 = vld [vmem:[#allocation5 + $0x110] sm:$0xff]
    %v99 = vld [vmem:[#allocation5 + $0x118] sm:$0xff]
    %v100 = vld [vmem:[#allocation5 + $0x120] sm:$0xff]
    %v101 = vld [vmem:[#allocation5 + $0x128] sm:$0xff]
    %v102 = vld [vmem:[#allocation5 + $0x130] sm:$0xff]
    %v103 = vld [vmem:[#allocation5 + $0x138] sm:$0xff]
    %v104 = vld [vmem:[#allocation5 + $0x140] sm:$0xff]
    %v105 = vld [vmem:[#allocation5 + $0x148] sm:$0xff]
    %v106 = vld [vmem:[#allocation5 + $0x150] sm:$0xff]
    %v107 = vld [vmem:[#allocation5 + $0x158] sm:$0xff]
    %v108 = vld [vmem:[#allocation5 + $0x160] sm:$0xff]
    %v109 = vld [vmem:[#allocation5 + $0x168] sm:$0xff]
    %v110 = vld [vmem:[#allocation5 + $0x170] sm:$0xff]
    %v111 = vld [vmem:[#allocation5 + $0x178] sm:$0xff]
    %v112 = vld [vmem:[#allocation5 + $0x180] sm:$0xff]
    %v113 = vld [vmem:[#allocation5 + $0x188] sm:$0xff]
    %v114 = vld [vmem:[#allocation5 + $0x190] sm:$0xff]
    %v115 = vld [vmem:[#allocation5 + $0x198] sm:$0xff]
    %v116 = vld [vmem:[#allocation5 + $0x1a0] sm:$0xff]
    %v117 = vld [vmem:[#allocation5 + $0x1a8] sm:$0xff]
    %v118 = vld [vmem:[#allocation5 + $0x1b0] sm:$0xff]
    %v119 = vld [vmem:[#allocation5 + $0x1b8] sm:$0xff]
    %v120 = vld [vmem:[#allocation5 + $0x1c0] sm:$0xff]
    %v121 = vld [vmem:[#allocation5 + $0x1c8] sm:$0xff]
    %v122 = vld [vmem:[#allocation5 + $0x1d0] sm:$0xff]
    %v123 = vld [vmem:[#allocation5 + $0x1d8] sm:$0xff]
    %v124 = vld [vmem:[#allocation5 + $0x1e0] sm:$0xff]
    %v125 = vld [vmem:[#allocation5 + $0x1e8] sm:$0xff]
    %v126 = vld [vmem:[#allocation5 + $0x1f0] sm:$0xff]
    %v127 = vld [vmem:[#allocation5 + $0x1f8] sm:$0xff]
    %v128 = vld [vmem:[%s2] sm:$0x1]
    %v130 = vlaneseq
    %v131 = vshrl.u32 %v130, 7
    %v132 = vsub.s32 0, %v131
    %v133 = vrot.slane %v128, %v132
    %135 = vmatprep.subr.mxu0 0.0
    %136 = vmatpush1.msra.mxu0 %v64
    %137 = vmatprep.subr.mxu0 0.0
    %138 = vmatpush1.msra.mxu0 %v65
    %139 = vmatprep.subr.mxu0 0.0
    %140 = vmatpush1.msra.mxu0 %v66
    %141 = vmatprep.subr.mxu0 0.0
    %142 = vmatpush1.msra.mxu0 %v67
    %143 = vmatprep.subr.mxu0 0.0
    %144 = vmatpush1.msra.mxu0 %v68
    %145 = vmatprep.subr.mxu0 0.0
    %146 = vmatpush1.msra.mxu0 %v69
    %147 = vmatprep.subr.mxu0 0.0
    %148 = vmatpush1.msra.mxu0 %v70
    %149 = vmatprep.subr.mxu0 0.0
    %150 = vmatpush1.msra.mxu0 %v71
    %151 = vmatprep.subr.mxu0 0.0
    %152 = vmatpush1.msra.mxu0 %v72
    %153 = vmatprep.subr.mxu0 0.0
    %154 = vmatpush1.msra.mxu0 %v73
    %155 = vmatprep.subr.mxu0 0.0
    %156 = vmatpush1.msra.mxu0 %v74
    %157 = vmatprep.subr.mxu0 0.0
    %158 = vmatpush1.msra.mxu0 %v75
    %159 = vmatprep.subr.mxu0 0.0
    %160 = vmatpush1.msra.mxu0 %v76
    %161 = vmatprep.subr.mxu0 0.0
    %162 = vmatpush1.msra.mxu0 %v77
    %163 = vmatprep.subr.mxu0 0.0
    %164 = vmatpush1.msra.mxu0 %v78
    %165 = vmatprep.subr.mxu0 0.0
    %166 = vmatpush1.msra.mxu0 %v79
    %167 = vmatprep.subr.mxu0 0.0
    %168 = vmatpush1.msra.mxu0 %v80
    %169 = vmatprep.subr.mxu0 0.0
    %170 = vmatpush1.msra.mxu0 %v81
    %171 = vmatprep.subr.mxu0 0.0
    %172 = vmatpush1.msra.mxu0 %v82
    %173 = vmatprep.subr.mxu0 0.0
    %174 = vmatpush1.msra.mxu0 %v83
    %175 = vmatprep.subr.mxu0 0.0
    %176 = vmatpush1.msra.mxu0 %v84
    %177 = vmatprep.subr.mxu0 0.0
    %178 = vmatpush1.msra.mxu0 %v85
    %179 = vmatprep.subr.mxu0 0.0
    %180 = vmatpush1.msra.mxu0 %v86
    %181 = vmatprep.subr.mxu0 0.0
    %182 = vmatpush1.msra.mxu0 %v87
    %183 = vmatprep.subr.mxu0 0.0
    %184 = vmatpush1.msra.mxu0 %v88
    %185 = vmatprep.subr.mxu0 0.0
    %186 = vmatpush1.msra.mxu0 %v89
    %187 = vmatprep.subr.mxu0 0.0
    %188 = vmatpush1.msra.mxu0 %v90
    %189 = vmatprep.subr.mxu0 0.0
    %190 = vmatpush1.msra.mxu0 %v91
    %191 = vmatprep.subr.mxu0 0.0
    %192 = vmatpush1.msra.mxu0 %v92
    %193 = vmatprep.subr.mxu0 0.0
    %194 = vmatpush1.msra.mxu0 %v93
    %195 = vmatprep.subr.mxu0 0.0
    %196 = vmatpush1.msra.mxu0 %v94
    %197 = vmatprep.subr.mxu0 0.0
    %198 = vmatpush1.msra.mxu0 %v95
    %199 = vmatprep.mubr.f32.mxu0 %v61
    %200 = vmatmul.mubr.f32.gmra.mrb[0].mxu0 %v60
    %v201 = vpop.f32.mrb[0].mxu0
    %v202 = vadd.f32 %v133, %v201
    %v203 = vpop.f32.mrb[0].mxu0
    %204 = vdwg.mxu0
    %205 = vmatprep.subr.mxu0 0.0
    %206 = vmatpush1.msra.mxu0 %v96
    %207 = vmatprep.subr.mxu0 0.0
    %208 = vmatpush1.msra.mxu0 %v97
    %209 = vmatprep.subr.mxu0 0.0
    %210 = vmatpush1.msra.mxu0 %v98
    %211 = vmatprep.subr.mxu0 0.0
    %212 = vmatpush1.msra.mxu0 %v99
    %213 = vmatprep.subr.mxu0 0.0
    %214 = vmatpush1.msra.mxu0 %v100
    %215 = vmatprep.subr.mxu0 0.0
    %216 = vmatpush1.msra.mxu0 %v101
    %217 = vmatprep.subr.mxu0 0.0
    %218 = vmatpush1.msra.mxu0 %v102
    %219 = vmatprep.subr.mxu0 0.0
    %220 = vmatpush1.msra.mxu0 %v103
    %221 = vmatprep.subr.mxu0 0.0
    %222 = vmatpush1.msra.mxu0 %v104
    %223 = vmatprep.subr.mxu0 0.0
    %224 = vmatpush1.msra.mxu0 %v105
    %225 = vmatprep.subr.mxu0 0.0
    %226 = vmatpush1.msra.mxu0 %v106
    %227 = vmatprep.subr.mxu0 0.0
    %228 = vmatpush1.msra.mxu0 %v107
    %229 = vmatprep.subr.mxu0 0.0
    %230 = vmatpush1.msra.mxu0 %v108
    %231 = vmatprep.subr.mxu0 0.0
    %232 = vmatpush1.msra.mxu0 %v109
    %233 = vmatprep.subr.mxu0 0.0
    %234 = vmatpush1.msra.mxu0 %v110
    %235 = vmatprep.subr.mxu0 0.0
    %236 = vmatpush1.msra.mxu0 %v111
    %237 = vmatprep.subr.mxu0 0.0
    %238 = vmatpush1.msra.mxu0 %v112
    %239 = vmatprep.subr.mxu0 0.0
    %240 = vmatpush1.msra.mxu0 %v113
    %241 = vmatprep.subr.mxu0 0.0
    %242 = vmatpush1.msra.mxu0 %v114
    %243 = vmatprep.subr.mxu0 0.0
    %244 = vmatpush1.msra.mxu0 %v115
    %245 = vmatprep.subr.mxu0 0.0
    %246 = vmatpush1.msra.mxu0 %v116
    %247 = vmatprep.subr.mxu0 0.0
    %248 = vmatpush1.msra.mxu0 %v117
    %249 = vmatprep.subr.mxu0 0.0
    %250 = vmatpush1.msra.mxu0 %v118
    %251 = vmatprep.subr.mxu0 0.0
    %252 = vmatpush1.msra.mxu0 %v119
    %253 = vmatprep.subr.mxu0 0.0
    %254 = vmatpush1.msra.mxu0 %v120
    %255 = vmatprep.subr.mxu0 0.0
    %256 = vmatpush1.msra.mxu0 %v121
    %257 = vmatprep.subr.mxu0 0.0
    %258 = vmatpush1.msra.mxu0 %v122
    %259 = vmatprep.subr.mxu0 0.0
    %260 = vmatpush1.msra.mxu0 %v123
    %261 = vmatprep.subr.mxu0 0.0
    %262 = vmatpush1.msra.mxu0 %v124
    %263 = vmatprep.subr.mxu0 0.0
    %264 = vmatpush1.msra.mxu0 %v125
    %265 = vmatprep.subr.mxu0 0.0
    %266 = vmatpush1.msra.mxu0 %v126
    %267 = vmatprep.subr.mxu0 0.0
    %268 = vmatpush1.msra.mxu0 %v127
    %269 = vmatprep.mubr.f32.mxu0 %v63
    %270 = vmatmul.mubr.f32.gmra.mrb[0].mxu0 %v62
    %v271 = vpop.f32.mrb[0].mxu0
    %v272 = vadd.f32 %v202, %v271
    %v273 = vpop.f32.mrb[0].mxu0
    %274 = vdwg.mxu0
    %v275 = vmax.f32 %v272, 0.0
    %v276 = vld [vmem:[#allocation7] sm:$0xff]
    %v277 = vld [vmem:[#allocation7 + $0x8] sm:$0xff]
    %v278 = vld [vmem:[#allocation7 + $0x10] sm:$0xff]
    %v279 = vld [vmem:[#allocation7 + $0x18] sm:$0xff]
    %v280 = vld [vmem:[#allocation7 + $0x20] sm:$0xff]
    %v281 = vld [vmem:[#allocation7 + $0x28] sm:$0xff]
    %v282 = vld [vmem:[#allocation7 + $0x30] sm:$0xff]
    %v283 = vld [vmem:[#allocation7 + $0x38] sm:$0xff]
    %v284 = vld [vmem:[#allocation7 + $0x40] sm:$0xff]
    %v285 = vld [vmem:[#allocation7 + $0x48] sm:$0xff]
    %v286 = vld [vmem:[#allocation7 + $0x50] sm:$0xff]
    %v287 = vld [vmem:[#allocation7 + $0x58] sm:$0xff]
    %v288 = vld [vmem:[#allocation7 + $0x60] sm:$0xff]
    %v289 = vld [vmem:[#allocation7 + $0x68] sm:$0xff]
    %v290 = vld [vmem:[#allocation7 + $0x70] sm:$0xff]
    %v291 = vld [vmem:[#allocation7 + $0x78] sm:$0xff]
    %v292 = vld [vmem:[%s4] sm:$0x1]
    %v294 = vlaneseq
    %v295 = vshrl.u32 %v294, 7
    %v296 = vsub.s32 0, %v295
    %v297 = vrot.slane %v292, %v296
    %299 = vmatprep.subr.mxu0 0.0
    %300 = vmatpush1.msra.mxu0 %v276
    %301 = vmatprep.subr.mxu0 0.0
    %302 = vmatpush1.msra.mxu0 %v277
    %303 = vmatprep.subr.mxu0 0.0
    %304 = vmatpush1.msra.mxu0 %v278
    %305 = vmatprep.subr.mxu0 0.0
    %306 = vmatpush1.msra.mxu0 %v279
    %307 = vmatprep.subr.mxu0 0.0
    %308 = vmatpush1.msra.mxu0 %v280
    %309 = vmatprep.subr.mxu0 0.0
    %310 = vmatpush1.msra.mxu0 %v281
    %311 = vmatprep.subr.mxu0 0.0
    %312 = vmatpush1.msra.mxu0 %v282
    %313 = vmatprep.subr.mxu0 0.0
    %314 = vmatpush1.msra.mxu0 %v283
    %315 = vmatprep.subr.mxu0 0.0
    %316 = vmatpush1.msra.mxu0 %v284
    %317 = vmatprep.subr.mxu0 0.0
    %318 = vmatpush1.msra.mxu0 %v285
    %319 = vmatprep.subr.mxu0 0.0
    %320 = vmatpush1.msra.mxu0 %v286
    %321 = vmatprep.subr.mxu0 0.0
    %322 = vmatpush1.msra.mxu0 %v287
    %323 = vmatprep.subr.mxu0 0.0
    %324 = vmatpush1.msra.mxu0 %v288
    %325 = vmatprep.subr.mxu0 0.0
    %326 = vmatpush1.msra.mxu0 %v289
    %327 = vmatprep.subr.mxu0 0.0
    %328 = vmatpush1.msra.mxu0 %v290
    %329 = vmatprep.subr.mxu0 0.0
    %330 = vmatpush1.msra.mxu0 %v291
    %331 = vmatprep.subr.mxu0 0.0
    %332 = vmatpush1.msra.mxu0 0.0
    %333 = vmatprep.subr.mxu0 0.0
    %334 = vmatpush1.msra.mxu0 0.0
    %335 = vmatprep.subr.mxu0 0.0
    %336 = vmatpush1.msra.mxu0 0.0
    %337 = vmatprep.subr.mxu0 0.0
    %338 = vmatpush1.msra.mxu0 0.0
    %339 = vmatprep.subr.mxu0 0.0
    %340 = vmatpush1.msra.mxu0 0.0
    %341 = vmatprep.subr.mxu0 0.0
    %342 = vmatpush1.msra.mxu0 0.0
    %343 = vmatprep.subr.mxu0 0.0
    %344 = vmatpush1.msra.mxu0 0.0
    %345 = vmatprep.subr.mxu0 0.0
    %346 = vmatpush1.msra.mxu0 0.0
    %347 = vmatprep.subr.mxu0 0.0
    %348 = vmatpush1.msra.mxu0 0.0
    %349 = vmatprep.subr.mxu0 0.0
    %350 = vmatpush1.msra.mxu0 0.0
    %351 = vmatprep.subr.mxu0 0.0
    %352 = vmatpush1.msra.mxu0 0.0
    %353 = vmatprep.subr.mxu0 0.0
    %354 = vmatpush1.msra.mxu0 0.0
    %355 = vmatprep.subr.mxu0 0.0
    %356 = vmatpush1.msra.mxu0 0.0
    %357 = vmatprep.subr.mxu0 0.0
    %358 = vmatpush1.msra.mxu0 0.0
    %359 = vmatprep.subr.mxu0 0.0
    %360 = vmatpush1.msra.mxu0 0.0
    %361 = vmatprep.subr.mxu0 0.0
    %362 = vmatpush1.msra.mxu0 0.0
    %363 = vmatprep.mubr.f32.mxu0 0.0
    %364 = vmatmul.mubr.f32.gmra.mrb[0].mxu0 %v275
    %v365 = vpop.f32.mrb[0].mxu0
    %v366 = vadd.f32 %v297, %v365
    %v367 = vpop.f32.mrb[0].mxu0
    %368 = vdwg.mxu0
    %369 = vst [vmem:[#allocation8] sm:$0xff] %v366
    // Predicated region
    $region34: #{tpu_custom_call.1} parent=1 // pred_check
      _
    $region35: #{tpu_custom_call.1} parent=1 // pred_check_branch
      %371 = sbr.rel (0) target = $region37
    $region36: #{tpu_custom_call.1} parent=1 // pred_region
      %s373 = ssub.s32 128, 128
      %374 = vsyncadd [#allocation4], %s373
      %s376 = sshll.u32 [#allocation8], 4
      %s377 = int_to_ptr.vmem [resolvable:$true] %s376
      %379 = dma.vmem_to_hbm [thread:$0]  %s377, 128, %s5, [#allocation4]
    $region37: #{tpu_custom_call.1} parent=1 // pred_fallthru
      _
    // Predicated region
    $region38: #{tpu_custom_call.1} parent=1 // pred_check
      _
    $region39: #{tpu_custom_call.1} parent=1 // pred_check_branch
      %381 = sbr.rel (0) target = $region41
    $region40: #{tpu_custom_call.1} parent=1 // pred_region
      %382 = dma.done [#allocation4], 128
    $region41: #{tpu_custom_call.1} parent=1 // pred_fallthru
      _
    %383 = vsyncpa [#allocation3], 1
    %384 = vsyncpa [#allocation6], 1
    %385 = vsyncpa [#allocation4], 1

</llo_original>
